<compile_context>
chip_gen: v6e
topology: v6e:2x2x1
jax: 0.10.0
libtpu: 0.0.40
codegen_flags: <defaults>
</compile_context>

<pallas_src>
import functools

import jax
import jax.numpy as jnp
from jax.experimental import pallas as pl
from jax.experimental.pallas import tpu as pltpu


def _round_up(x, m):
    return (x + m - 1) // m * m


def _mixture_kernel(logits_ref, eps_ref, gumbel_ref, out_ref, *, half, disc, inv_tau):
    """One batch-tile of the mixture reparameterization.

    logits_ref : [TB, 2*half + disc]   full logit rows (mu | logvar | disc)
    eps_ref    : [TB, half]            standard normal noise
    gumbel_ref : [TB, disc]            gumbel(0,1) noise
    out_ref    : [TB, half + 2*disc]   merged slab: [gauss_z | soft_z | log_q]
    """
    x = logits_ref[...].astype(jnp.float32)
    mu = x[:, :half]
    logvar = x[:, half:2 * half]
    dl = x[:, 2 * half:]

    # ---- continuous (isotropic gaussian) reparameterization ----
    gauss_z = mu + jnp.exp(0.5 * logvar) * eps_ref[...].astype(jnp.float32)

    # ---- log_softmax(disc_logits): exported as a distribution parameter ----
    m = jnp.max(dl, axis=-1, keepdims=True)
    sh = dl - m
    lse = jnp.log(jnp.sum(jnp.exp(sh), axis=-1, keepdims=True))
    log_q = sh - lse

    # ---- discrete (gumbel-softmax) reparameterization ----
    # softmax((log_softmax(x) + g)/tau) == softmax((x + g)/tau): the per-row
    # constant (max + lse)/tau cancels inside softmax, so we can work on the
    # raw logits and keep `soft` independent of the log_q reduction above.
    y = (dl + gumbel_ref[...].astype(jnp.float32)) * inv_tau
    ym = jnp.max(y, axis=-1, keepdims=True)
    ye = jnp.exp(y - ym)
    denom = jnp.sum(ye, axis=-1, keepdims=True)
    soft = ye * pl.reciprocal(denom, approx=True)   # EUP vrcp, frees VALU

    # ---- write the single merged output slab ----
    # Feature widths are far below 128 lanes, so these are masked stores in
    # any arrangement; one fused output keeps it to a single DMA stream.
    out_ref[:, :half] = gauss_z.astype(out_ref.dtype)
    out_ref[:, half:half + disc] = soft.astype(out_ref.dtype)
    out_ref[:, half + disc:] = log_q.astype(out_ref.dtype)


def mixture_forward(logits, eps, gumbel, *, continuous_size, discrete_size,
                    tau=1.0, tile_b=512):
    """Pallas-backed Mixture.forward (training / force=True path).

    logits : [B, continuous_size + discrete_size]
    eps    : [B, continuous_size // 2]   N(0,1) noise
    gumbel : [B, discrete_size]          Gumbel(0,1) noise
    Returns (merged, params) mirroring the PyTorch module.
    """
    B, F = logits.shape
    assert F == continuous_size + discrete_size
    assert continuous_size % 2 == 0
    half = continuous_size // 2

    # Batch tile: large (amortize per-grid-step overhead), multiple of 8.
    tb = min(tile_b, _round_up(B, 8))
    # If a single tile would cover the whole batch, split into 2 grid steps so
    # both v7x TensorCores get work ("parallel" axis); negligible cost on
    # single-TC v5e/v6e.
    if B > 8 and _round_up(B, tb) == tb:
        tb = _round_up(pl.cdiv(B, 2), 8)

    Bp = _round_up(B, tb)
    if Bp != B:
        pad = ((0, Bp - B), (0, 0))
        logits_p = jnp.pad(logits, pad)
        eps_p = jnp.pad(eps, pad)
        gumbel_p = jnp.pad(gumbel, pad)
    else:
        logits_p, eps_p, gumbel_p = logits, eps, gumbel

    out_w = half + 2 * discrete_size
    grid = (Bp // tb,)
    row_spec = lambda w: pl.BlockSpec((tb, w), lambda i: (i, 0))

    slab = pl.pallas_call(
        functools.partial(_mixture_kernel, half=half, disc=discrete_size,
                          inv_tau=float(1.0 / tau)),
        out_shape=jax.ShapeDtypeStruct((Bp, out_w), jnp.float32),
        grid_spec=pltpu.PrefetchScalarGridSpec(
            num_scalar_prefetch=0,
            grid=grid,
            in_specs=[row_spec(F),
                      row_spec(half),
                      row_spec(discrete_size)],
            out_specs=row_spec(out_w),
        ),
        compiler_params=pltpu.CompilerParams(
            dimension_semantics=("parallel",)),
    )(logits_p, eps_p, gumbel_p)

    slab = slab[:B]
    z = slab[:, :half + discrete_size]
    soft = slab[:, half:half + discrete_size]
    log_q = slab[:, half + discrete_size:]

    # mu / logvar are verbatim input slices: free XLA slices, no kernel traffic.
    mu = logits[:, :half]
    logvar = logits[:, half:continuous_size]

    params = {
        'gaussian': {'mu': mu, 'logvar': logvar},
        'discrete': {'logits': log_q, 'z_soft': soft},
        'logits': logits,
        'z': z,
    }
    return z, params


def _reference_forward(logits, eps, gumbel, *, continuous_size, tau=1.0):
    """Pure-JAX reference for correctness checking."""
    half = continuous_size // 2
    cont = logits[:, :continuous_size]
    disc = logits[:, continuous_size:]
    mu, logvar = cont[:, :half], cont[:, half:]
    gz = mu + jnp.exp(0.5 * logvar) * eps
    log_q = jax.nn.log_softmax(disc, axis=-1)
    soft = jax.nn.softmax((log_q + gumbel) / tau, axis=-1)
    return jnp.concatenate([gz, soft], axis=-1), log_q


if __name__ == "__main__":
    # config (small, consistent with the module's __init__):
    continuous_size = 32   # -> gaussian output_size = 16
    discrete_size = 16
    tau = 1.0
    half = continuous_size // 2

    # batch=16 hits the exact-tile path; batch=20 exercises the padding path.
    for batch in (16, 20):
        key = jax.random.PRNGKey(0)
        k_logits, k_eps, k_u = jax.random.split(key, 3)

        logits = jax.random.normal(
            k_logits, (batch, continuous_size + discrete_size), dtype=jnp.float32)
        eps = jax.random.normal(k_eps, (batch, half), dtype=jnp.float32)
        # gumbel(0,1) noise from uniform (same construction as sample_gumbel)
        u = jax.random.uniform(k_u, (batch, discrete_size), dtype=jnp.float32)
        gumbel = -jnp.log(-jnp.log(u + 1e-9) + 1e-9)

        merged, params = mixture_forward(
            logits, eps, gumbel,
            continuous_size=continuous_size,
            discrete_size=discrete_size,
            tau=tau)
        merged = jax.block_until_ready(merged)

        ref_z, ref_logq = _reference_forward(
            logits, eps, gumbel, continuous_size=continuous_size, tau=tau)

        assert merged.shape == (batch, half + discrete_size)
        # gaussian part: exact arithmetic path
        assert jnp.allclose(merged[:, :half], ref_z[:, :half], atol=1e-5, rtol=1e-5)
        # discrete part uses EUP approximate reciprocal -> slightly looser tol
        assert jnp.allclose(merged[:, half:], ref_z[:, half:], atol=2e-3, rtol=2e-3)
        assert jnp.allclose(params['discrete']['logits'], ref_logq,
                            atol=1e-4, rtol=1e-4)
        assert jnp.allclose(params['gaussian']['mu'], logits[:, :half])
        assert jnp.allclose(params['gaussian']['logvar'],
                            logits[:, half:continuous_size])
        assert jnp.allclose(params['z'], merged)

    # TODO(synk): eval-mode (training=False, force=False) path returns mu / hard
    # argmax one-hot straight-through; only the training reparam path is kernelized.
    print("KERNEL_OK")
</pallas_src>

<mosaic_0001>
module attributes {stable_mosaic.version = 11 : i64} {
  func.func @_mixture_kernel(%arg0: i32, %arg1: memref<8x48xf32, #tpu.memory_space<vmem>>, %arg2: memref<8x16xf32, #tpu.memory_space<vmem>>, %arg3: memref<8x16xf32, #tpu.memory_space<vmem>>, %arg4: memref<8x48xf32, #tpu.memory_space<vmem>>) attributes {dimension_semantics = [#tpu.dimension_semantics<parallel>], iteration_bounds = array<i64: 2>, scalar_prefetch = 0 : i64, scratch_operands = 0 : i64, tpu.core_type = #tpu.core_type<tc>, window_params = [{transform_indices = @transform_0, window_bounds = array<i64: 8, 48>}, {transform_indices = @transform_1, window_bounds = array<i64: 8, 16>}, {transform_indices = @transform_2, window_bounds = array<i64: 8, 16>}, {transform_indices = @transform_3, window_bounds = array<i64: 8, 48>}]} {
    %c0 = arith.constant 0 : index
    %c0_0 = arith.constant 0 : index
    %0 = vector.load %arg1[%c0, %c0_0] : memref<8x48xf32, #tpu.memory_space<vmem>>, vector<8x48xf32>
    %1 = vector.extract_strided_slice %0 {offsets = [0, 0], sizes = [8, 16], strides = [1, 1]} : vector<8x48xf32> to vector<8x16xf32>
    %2 = vector.extract_strided_slice %0 {offsets = [0, 16], sizes = [8, 16], strides = [1, 1]} : vector<8x48xf32> to vector<8x16xf32>
    %3 = vector.extract_strided_slice %0 {offsets = [0, 32], sizes = [8, 16], strides = [1, 1]} : vector<8x48xf32> to vector<8x16xf32>
    %cst = arith.constant 5.000000e-01 : f32
    %4 = vector.broadcast %cst : f32 to vector<8x16xf32>
    %5 = arith.mulf %4, %2 : vector<8x16xf32>
    %6 = math.exp %5 : vector<8x16xf32>
    %c0_1 = arith.constant 0 : index
    %c0_2 = arith.constant 0 : index
    %7 = vector.load %arg2[%c0_1, %c0_2] : memref<8x16xf32, #tpu.memory_space<vmem>>, vector<8x16xf32>
    %8 = arith.mulf %6, %7 : vector<8x16xf32>
    %9 = arith.addf %1, %8 : vector<8x16xf32>
    %cst_3 = arith.constant dense<0xFF800000> : vector<8xf32>
    %10 = vector.multi_reduction <maximumf>, %3, %cst_3 [1] : vector<8x16xf32> to vector<8xf32>
    %11 = vector.shape_cast %10 : vector<8xf32> to vector<8x1xf32>
    %12 = vector.broadcast %11 : vector<8x1xf32> to vector<8x16xf32>
    %13 = arith.subf %3, %12 : vector<8x16xf32>
    %14 = math.exp %13 : vector<8x16xf32>
    %cst_4 = arith.constant dense<0.000000e+00> : vector<8xf32>
    %15 = vector.multi_reduction <add>, %14, %cst_4 [1] : vector<8x16xf32> to vector<8xf32>
    %16 = vector.shape_cast %15 : vector<8xf32> to vector<8x1xf32>
    %17 = math.log %16 : vector<8x1xf32>
    %18 = vector.broadcast %17 : vector<8x1xf32> to vector<8x16xf32>
    %19 = arith.subf %13, %18 : vector<8x16xf32>
    %c0_5 = arith.constant 0 : index
    %c0_6 = arith.constant 0 : index
    %20 = vector.load %arg3[%c0_5, %c0_6] : memref<8x16xf32, #tpu.memory_space<vmem>>, vector<8x16xf32>
    %21 = arith.addf %3, %20 : vector<8x16xf32>
    %cst_7 = arith.constant 1.000000e+00 : f32
    %22 = vector.broadcast %cst_7 : f32 to vector<8x16xf32>
    %23 = arith.mulf %21, %22 : vector<8x16xf32>
    %cst_8 = arith.constant dense<0xFF800000> : vector<8xf32>
    %24 = vector.multi_reduction <maximumf>, %23, %cst_8 [1] : vector<8x16xf32> to vector<8xf32>
    %25 = vector.shape_cast %24 : vector<8xf32> to vector<8x1xf32>
    %26 = vector.broadcast %25 : vector<8x1xf32> to vector<8x16xf32>
    %27 = arith.subf %23, %26 : vector<8x16xf32>
    %28 = math.exp %27 : vector<8x16xf32>
    %cst_9 = arith.constant dense<0.000000e+00> : vector<8xf32>
    %29 = vector.multi_reduction <add>, %28, %cst_9 [1] : vector<8x16xf32> to vector<8xf32>
    %30 = vector.shape_cast %29 : vector<8xf32> to vector<8x1xf32>
    %31 = tpu.reciprocal %30 {approx = true} : vector<8x1xf32> -> vector<8x1xf32>
    %32 = vector.broadcast %31 : vector<8x1xf32> to vector<8x16xf32>
    %33 = arith.mulf %28, %32 : vector<8x16xf32>
    %c0_10 = arith.constant 0 : index
    %c0_11 = arith.constant 0 : index
    %34 = vector.load %arg4[%c0_10, %c0_11] : memref<8x48xf32, #tpu.memory_space<vmem>>, vector<8x16xf32>
    tpu.vector_store %arg4[%c0_10, %c0_11], %9 {strides = array<i32>} : memref<8x48xf32, #tpu.memory_space<vmem>>, vector<8x16xf32>,
    %c0_12 = arith.constant 0 : index
    %c16 = arith.constant 16 : index
    %35 = vector.load %arg4[%c0_12, %c16] : memref<8x48xf32, #tpu.memory_space<vmem>>, vector<8x16xf32>
    tpu.vector_store %arg4[%c0_12, %c16], %33 {strides = array<i32>} : memref<8x48xf32, #tpu.memory_space<vmem>>, vector<8x16xf32>,
    %c0_13 = arith.constant 0 : index
    %c32 = arith.constant 32 : index
    %36 = vector.load %arg4[%c0_13, %c32] : memref<8x48xf32, #tpu.memory_space<vmem>>, vector<8x16xf32>
    tpu.vector_store %arg4[%c0_13, %c32], %19 {strides = array<i32>} : memref<8x48xf32, #tpu.memory_space<vmem>>, vector<8x16xf32>,
    return
  }
  func.func @transform_0(%arg0: i32) -> (i32, i32) {
    %c0_i32 = arith.constant 0 : i32
    %c0_i32_0 = arith.constant 0 : i32
    return %arg0, %c0_i32 : i32, i32
  }
  func.func @transform_1(%arg0: i32) -> (i32, i32) {
    %c0_i32 = arith.constant 0 : i32
    %c0_i32_0 = arith.constant 0 : i32
    return %arg0, %c0_i32 : i32, i32
  }
  func.func @transform_2(%arg0: i32) -> (i32, i32) {
    %c0_i32 = arith.constant 0 : i32
    %c0_i32_0 = arith.constant 0 : i32
    return %arg0, %c0_i32 : i32, i32
  }
  func.func @transform_3(%arg0: i32) -> (i32, i32) {
    %c0_i32 = arith.constant 0 : i32
    %c0_i32_0 = arith.constant 0 : i32
    return %arg0, %c0_i32 : i32, i32
  }
}

</mosaic_0001>

<llo_original>
// kernel: tpu_custom_call.1
$region0: #{tpu_custom_call.1}
  #allocation0 [shape = 'u32[]', space=smem, size = 0x4, offset = 0x4, fixed_abs, tag = 'smem constant byte address 0x4 - core index']
  #allocation1 [shape = 'u32[144,128]{1,0:T(1,128)}', space=vmem, size = 0x12000, scoped, tag = 'internal scratch']
  %s0 = inlined_call_operand.hbm [shape: f32[16,48], index: 0, kind: input, shape index: {}]
  %s1 = inlined_call_operand.hbm [shape: f32[16,16], index: 1, kind: input, shape index: {}]
  %s2 = inlined_call_operand.hbm [shape: f32[16,16], index: 2, kind: input, shape index: {}]
  %s3 = inlined_call_operand.hbm [shape: f32[16,48], index: 3, kind: output, shape index: {}]
  %s4 = sld [smem:[#allocation0]]
  $region57: #{tpu_custom_call.1} parent=0
    _
  %s6 = ssub.s32 1, %s4
  %s7 = scalar_select 0, %s6, %s4
  $region1: #{tpu_custom_call.1} parent=0
    #allocation2 [shape = 'u8[8192]{0}', space=vmem, size = 0x2000, scoped, tag = 'input window, operand 0']
    #allocation3 [shape = 's32[2]{0}', space=sflag, size = 0x8, scoped, tag = 'scoped memory for tpu_custom_call.1']
    #allocation4 [shape = 's32[2]{0}', space=sflag, size = 0x8, scoped, tag = 'scoped memory for tpu_custom_call.1']
    #allocation5 [shape = 'u8[8192]{0}', space=vmem, size = 0x2000, scoped, tag = 'input window, operand 1']
    #allocation6 [shape = 's32[2]{0}', space=sflag, size = 0x8, scoped, tag = 'scoped memory for tpu_custom_call.1']
    #allocation7 [shape = 'u8[8192]{0}', space=vmem, size = 0x2000, scoped, tag = 'input window, operand 2']
    #allocation8 [shape = 'u8[8192]{0}', space=vmem, size = 0x2000, scoped, tag = 'output window, operand 0']
    %8 = vsyncpa [#allocation3], 0
    %s9 = scalar_lea.sflag [#allocation3], 1
    %10 = vsyncpa %s9, 0
    %11 = vsyncpa [#allocation6], 0
    %s12 = scalar_lea.sflag [#allocation6], 1
    %13 = vsyncpa %s12, 0
    %14 = vsyncpa [#allocation4], 0
    %s15 = scalar_lea.sflag [#allocation4], 1
    %16 = vsyncpa %s15, 0
    loop: start=0, step=1, limit=4
    $region2: #{tpu_custom_call.1} parent=1 // loop_pre_header
      _
    $region3: #{tpu_custom_call.1} parent=1 // loop_header
      %s18 = sphi 0, %s22
      %p19 = scmp.ge.s32.totalorder %s18, 4
      %s28 = sphi 0, %s30
      %s31 = sphi 0, %s28
      %s32 = sphi 0, %s31
      %s48 = sphi 0, %s32
      %s54 = sphi 0, %s56
      %s57 = sphi 0, %s54
      %s58 = sphi 0, %s57
      %s74 = sphi 0, %s58
      %s80 = sphi 0, %s82
      %s83 = sphi 0, %s80
      %s84 = sphi 0, %s83
      %s100 = sphi 0, %s84
      %s106 = sphi 0, %s108
      %s109 = sphi 0, %s106
      %s110 = sphi 0, %s109
      %s126 = sphi 0, %s110
    $region4: #{tpu_custom_call.1} parent=1 // loop_header_branch
      %21 = sbr.rel (%p19) target = $region8
    $region5: #{tpu_custom_call.1} parent=1 // loop_body
      %s23 = ssub.s32 %s18, 1
      %s24 = ssub.s32 %s18, 2
      %s25 = sadd.s32 %s18, 1
      %s26 = ssub.s32 %s18, %s25
      %p27 = scmp.eq.s32.totalorder %s26, 0
      %s29 = sadd.s32 %s28, 1
      %s30 = scalar_select %p27, %s28, %s29
      %p33 = pneg %p27
      %p34 = scmp.eq.s32.totalorder %s18, 1
      %p35 = por %p33, %p34
      %p36 = scmp.ne.s32.totalorder %s28, %s31
      %p37 = scmp.eq.s32.totalorder %s18, 0
      %p38 = por %p36, %p37
      %p39 = scmp.ne.s32.totalorder %s28, %s31
      %p40 = scmp.eq.s32.totalorder %s23, 1
      %p41 = por %p39, %p40
      %p42 = scmp.ne.s32.totalorder %s31, %s32
      %p43 = scmp.eq.s32.totalorder %s23, 0
      %p44 = por %p42, %p43
      %p45 = scmp.ne.s32.totalorder %s31, %s32
      %p46 = scmp.eq.s32.totalorder %s24, 1
      %p47 = por %p45, %p46
      %p49 = scmp.ne.s32.totalorder %s32, %s48
      %p50 = scmp.eq.s32.totalorder %s24, 0
      %p51 = por %p49, %p50
      %s52 = ssub.s32 %s18, %s25
      %p53 = scmp.eq.s32.totalorder %s52, 0
      %s55 = sadd.s32 %s54, 1
      %s56 = scalar_select %p53, %s54, %s55
      %p59 = pneg %p53
      %p60 = scmp.eq.s32.totalorder %s18, 1
      %p61 = por %p59, %p60
      %p62 = scmp.ne.s32.totalorder %s54, %s57
      %p63 = scmp.eq.s32.totalorder %s18, 0
      %p64 = por %p62, %p63
      %p65 = scmp.ne.s32.totalorder %s54, %s57
      %p66 = scmp.eq.s32.totalorder %s23, 1
      %p67 = por %p65, %p66
      %p68 = scmp.ne.s32.totalorder %s57, %s58
      %p69 = scmp.eq.s32.totalorder %s23, 0
      %p70 = por %p68, %p69
      %p71 = scmp.ne.s32.totalorder %s57, %s58
      %p72 = scmp.eq.s32.totalorder %s24, 1
      %p73 = por %p71, %p72
      %p75 = scmp.ne.s32.totalorder %s58, %s74
      %p76 = scmp.eq.s32.totalorder %s24, 0
      %p77 = por %p75, %p76
      %s78 = ssub.s32 %s18, %s25
      %p79 = scmp.eq.s32.totalorder %s78, 0
      %s81 = sadd.s32 %s80, 1
      %s82 = scalar_select %p79, %s80, %s81
      %p85 = pneg %p79
      %p86 = scmp.eq.s32.totalorder %s18, 1
      %p87 = por %p85, %p86
      %p88 = scmp.ne.s32.totalorder %s80, %s83
      %p89 = scmp.eq.s32.totalorder %s18, 0
      %p90 = por %p88, %p89
      %p91 = scmp.ne.s32.totalorder %s80, %s83
      %p92 = scmp.eq.s32.totalorder %s23, 1
      %p93 = por %p91, %p92
      %p94 = scmp.ne.s32.totalorder %s83, %s84
      %p95 = scmp.eq.s32.totalorder %s23, 0
      %p96 = por %p94, %p95
      %p97 = scmp.ne.s32.totalorder %s83, %s84
      %p98 = scmp.eq.s32.totalorder %s24, 1
      %p99 = por %p97, %p98
      %p101 = scmp.ne.s32.totalorder %s84, %s100
      %p102 = scmp.eq.s32.totalorder %s24, 0
      %p103 = por %p101, %p102
      %s104 = ssub.s32 %s18, %s25
      %p105 = scmp.eq.s32.totalorder %s104, 0
      %s107 = sadd.s32 %s106, 1
      %s108 = scalar_select %p105, %s106, %s107
      %p111 = pneg %p105
      %p112 = scmp.eq.s32.totalorder %s18, 1
      %p113 = por %p111, %p112
      %p114 = scmp.ne.s32.totalorder %s106, %s109
      %p115 = scmp.eq.s32.totalorder %s18, 0
      %p116 = por %p114, %p115
      %p117 = scmp.ne.s32.totalorder %s106, %s109
      %p118 = scmp.eq.s32.totalorder %s23, 1
      %p119 = por %p117, %p118
      %p120 = scmp.ne.s32.totalorder %s109, %s110
      %p121 = scmp.eq.s32.totalorder %s23, 0
      %p122 = por %p120, %p121
      %p123 = scmp.ne.s32.totalorder %s109, %s110
      %p124 = scmp.eq.s32.totalorder %s24, 1
      %p125 = por %p123, %p124
      %p127 = scmp.ne.s32.totalorder %s110, %s126
      %p128 = scmp.eq.s32.totalorder %s24, 0
      %p129 = por %p127, %p128
      %p130 = scmp.le.s32.totalorder 1, %s18
      %p131 = scmp.lt.s32.totalorder %s18, 3
      %p132 = pnand %p130, %p131
      %p133 = pneg %p132
      // Predicated region
      $region9: #{tpu_custom_call.1} parent=5 // pred_check
        _
      $region10: #{tpu_custom_call.1} parent=5 // pred_check_branch
        %135 = sbr.rel (%p132) target = $region12
      $region11: #{tpu_custom_call.1} parent=5 // pred_region
        %s136 = ssub.s32 %s18, 1
      $region12: #{tpu_custom_call.1} parent=5 // pred_fallthru
        _
      %p137 = scmp.lt.s32.totalorder %s18, 2
      // Predicated region
      $region13: #{tpu_custom_call.1} parent=5 // pred_check
        %p138 = pneg %p137
      $region14: #{tpu_custom_call.1} parent=5 // pred_check_branch
        %140 = sbr.rel (%p138) target = $region16
      $region15: #{tpu_custom_call.1} parent=5 // pred_region
        // Predicated region
        $region17: #{tpu_custom_call.1} parent=15 // pred_check
          %p141 = pneg %p38
        $region18: #{tpu_custom_call.1} parent=15 // pred_check_branch
          %143 = sbr.rel (%p141) target = $region20
        $region19: #{tpu_custom_call.1} parent=15 // pred_region
          %s144 = sand.u32 %s28, 1
          %s145 = scalar_lea.sflag [#allocation3], %s144
          %s146 = sand.u32 %s28, 1
          %s147 = smul.addr %s146, 8
          %s148 = scalar_lea.vmem [#allocation2], %s147
          %s150 = ssub.s32 128, 128
          %151 = vsyncadd %s145, %s150
          %s152 = smul.addr %s18, 128
          %s153 = scalar_lea.hbm %s0, %s152
          %s155 = sshll.u32 %s148, 4
          %s156 = int_to_ptr.vmem [resolvable:$true] %s155
          %158 = dma.hbm_to_vmem [thread:$0]  %s153, 128, %s156, %s145
        $region20: #{tpu_custom_call.1} parent=15 // pred_fallthru
          _
        // Predicated region
        $region21: #{tpu_custom_call.1} parent=15 // pred_check
          %p159 = pneg %p64
        $region22: #{tpu_custom_call.1} parent=15 // pred_check_branch
          %161 = sbr.rel (%p159) target = $region24
        $region23: #{tpu_custom_call.1} parent=15 // pred_region
          %s162 = sand.u32 %s18, 1
          %s163 = scalar_lea.sflag [#allocation6], %s162
          %s164 = sand.u32 %s54, 1
          %s165 = smul.addr %s164, 8
          %s166 = scalar_lea.vmem [#allocation5], %s165
          %s168 = ssub.s32 128, 128
          %169 = vsyncadd %s163, %s168
          %s170 = smul.addr %s18, 128
          %s171 = scalar_lea.hbm %s1, %s170
          %s173 = sshll.u32 %s166, 4
          %s174 = int_to_ptr.vmem [resolvable:$true] %s173
          %176 = dma.hbm_to_vmem [thread:$0]  %s171, 128, %s174, %s163
        $region24: #{tpu_custom_call.1} parent=15 // pred_fallthru
          _
        // Predicated region
        $region25: #{tpu_custom_call.1} parent=15 // pred_check
          %p177 = pneg %p90
        $region26: #{tpu_custom_call.1} parent=15 // pred_check_branch
          %179 = sbr.rel (%p177) target = $region28
        $region27: #{tpu_custom_call.1} parent=15 // pred_region
          %s180 = sand.u32 %s18, 1
          %s181 = scalar_lea.sflag [#allocation6], %s180
          %s182 = sand.u32 %s80, 1
          %s183 = smul.addr %s182, 8
          %s184 = scalar_lea.vmem [#allocation7], %s183
          %s186 = ssub.s32 128, 128
          %187 = vsyncadd %s181, %s186
          %s188 = smul.addr %s18, 128
          %s189 = scalar_lea.hbm %s2, %s188
          %s191 = sshll.u32 %s184, 4
          %s192 = int_to_ptr.vmem [resolvable:$true] %s191
          %194 = dma.hbm_to_vmem [thread:$0]  %s189, 128, %s192, %s181
        $region28: #{tpu_custom_call.1} parent=15 // pred_fallthru
          _
      $region16: #{tpu_custom_call.1} parent=5 // pred_fallthru
        _
      %p195 = scmp.le.s32.totalorder 1, %s18
      %p196 = scmp.lt.s32.totalorder %s18, 3
      %p197 = pnand %p195, %p196
      %p198 = pneg %p197
      // Predicated region
      $region29: #{tpu_custom_call.1} parent=5 // pred_check
        _
      $region30: #{tpu_custom_call.1} parent=5 // pred_check_branch
        %200 = sbr.rel (%p197) target = $region32
      $region31: #{tpu_custom_call.1} parent=5 // pred_region
        %s201 = ssub.s32 %s18, 1
        %s202 = sand.u32 %s31, 1
        %s203 = scalar_lea.sflag [#allocation3], %s202
        %s204 = sand.u32 %s31, 1
        %s205 = smul.addr %s204, 8
        %s206 = scalar_lea.vmem [#allocation2], %s205
        // Predicated region
        $region33: #{tpu_custom_call.1} parent=31 // pred_check
          %p207 = pneg %p44
        $region34: #{tpu_custom_call.1} parent=31 // pred_check_branch
          %209 = sbr.rel (%p207) target = $region36
        $region35: #{tpu_custom_call.1} parent=31 // pred_region
          %210 = dma.done %s203, 128
        $region36: #{tpu_custom_call.1} parent=31 // pred_fallthru
          _
        %s211 = sand.u32 %s23, 1
        %s212 = scalar_lea.sflag [#allocation6], %s211
        %s213 = sand.u32 %s57, 1
        %s214 = smul.addr %s213, 8
        %s215 = scalar_lea.vmem [#allocation5], %s214
        // Predicated region
        $region37: #{tpu_custom_call.1} parent=31 // pred_check
          %p216 = pneg %p70
        $region38: #{tpu_custom_call.1} parent=31 // pred_check_branch
          %218 = sbr.rel (%p216) target = $region40
        $region39: #{tpu_custom_call.1} parent=31 // pred_region
          %219 = dma.done %s212, 128
        $region40: #{tpu_custom_call.1} parent=31 // pred_fallthru
          _
        %s220 = sand.u32 %s23, 1
        %s221 = scalar_lea.sflag [#allocation6], %s220
        %s222 = sand.u32 %s83, 1
        %s223 = smul.addr %s222, 8
        %s224 = scalar_lea.vmem [#allocation7], %s223
        // Predicated region
        $region41: #{tpu_custom_call.1} parent=31 // pred_check
          %p225 = pneg %p96
        $region42: #{tpu_custom_call.1} parent=31 // pred_check_branch
          %227 = sbr.rel (%p225) target = $region44
        $region43: #{tpu_custom_call.1} parent=31 // pred_region
          %228 = dma.done %s221, 128
        $region44: #{tpu_custom_call.1} parent=31 // pred_fallthru
          _
        %s229 = sand.u32 %s31, 1
        %s230 = scalar_lea.sflag [#allocation3], %s229
        %s231 = sand.u32 %s31, 1
        %s232 = smul.addr %s231, 8
        %s233 = scalar_lea.vmem [#allocation2], %s232
        %p234 = pneg %p44
        %p235 = pneg %p41
        %s236 = sand.u32 %s23, 1
        %s237 = scalar_lea.sflag [#allocation6], %s236
        %s238 = sand.u32 %s57, 1
        %s239 = smul.addr %s238, 8
        %s240 = scalar_lea.vmem [#allocation5], %s239
        %p241 = pneg %p70
        %p242 = pneg %p67
        %s243 = sand.u32 %s23, 1
        %s244 = scalar_lea.sflag [#allocation6], %s243
        %s245 = sand.u32 %s83, 1
        %s246 = smul.addr %s245, 8
        %s247 = scalar_lea.vmem [#allocation7], %s246
        %p248 = pneg %p96
        %p249 = pneg %p93
        %p250 = pneg %p122
        %p251 = pneg %p119
        %s252 = sand.u32 %s109, 1
        %s253 = scalar_lea.sflag [#allocation4], %s252
        %s254 = sand.u32 %s109, 1
        %s255 = smul.addr %s254, 8
        %s256 = scalar_lea.vmem [#allocation8], %s255
        %v257 = vld [vmem:[%s206] sm:$0xff]
        %v258 = vmul.f32 %v257, 0.5
        %v259 = vmul.f32 %v258, 1.442695
        %v260 = vpow.pop %v259
        %v261 = vld [vmem:[%s215] sm:$0xff]
        %263 = vrot.lane.b32.xlu0 %v261, 16
        %v264 = vpop.permute.xlu0 %263
        %v266 = vmul.f32 %v260, %v264
        %268 = vrot.lane.b32.xlu0 %v266, 112
        %v269 = vpop.permute.xlu0 %268
        %v271 = vadd.f32 %v257, %v269
        %vm272 = vcmask 392448
        %v273 = vsel %vm272, %v257, -inf
        %274 = vmax.xlane.f32.xlu0 %v273
        %v275 = vpop.xlane.xlu0 %274
        %v276 = vsub.f32 %v257, %v275
        %v277 = vmul.f32 %v276, 1.442695
        %v278 = vpow.pop %v277
        %280 = vrot.lane.b32.xlu0 %v278, 96
        %v281 = vpop.permute.xlu0 %280
        %vm283 = vcmask 130048
        %v284 = vsel %vm283, %v281, 0.0
        %285 = vadd.xlane.f32.xlu0 %v284
        %v286 = vpop.xlane.xlu0 %285
        %v287 = vlog2.pop %v286
        %v288 = vmul.f32 %v287, 0.6931472
        %v289 = vsub.f32 %v276, %v288
        %v290 = vld [vmem:[%s224] sm:$0xff]
        %292 = vrot.lane.b32.xlu0 %v290, 32
        %v293 = vpop.permute.xlu0 %292
        %v295 = vadd.f32 %v257, %v293
        %v296 = vsel %vm272, %v295, -inf
        %297 = vmax.xlane.f32.xlu0 %v296
        %v298 = vpop.xlane.xlu0 %297
        %v299 = vsub.f32 %v295, %v298
        %v300 = vmul.f32 %v299, 1.442695
        %v301 = vpow.pop %v300
        %303 = vrot.lane.b32.xlu0 %v301, 96
        %v304 = vpop.permute.xlu0 %303
        %v306 = vsel %vm283, %v304, 0.0
        %307 = vadd.xlane.f32.xlu0 %v306
        %v308 = vpop.xlane.xlu0 %307
        %v309 = vrcp.pop %v308
        %v310 = vmul.f32 %v301, %v309
        %311 = vst.msk [vmem:[%s256] sm:$0xff] %vm283, %v271
        %313 = vrot.lane.b32.xlu0 %v310, 112
        %v314 = vpop.permute.xlu0 %313
        %vm316 = vcmask 261248
        %317 = vst.msk [vmem:[%s256] sm:$0xff] %vm316, %v314
        %318 = vst.msk [vmem:[%s256] sm:$0xff] %vm272, %v289
        %s319 = sand.u32 %s109, 1
        %s320 = scalar_lea.sflag [#allocation4], %s319
        %s321 = sand.u32 %s109, 1
        %s322 = smul.addr %s321, 8
        %s323 = scalar_lea.vmem [#allocation8], %s322
        // Predicated region
        $region45: #{tpu_custom_call.1} parent=31 // pred_check
          %p324 = pneg %p119
        $region46: #{tpu_custom_call.1} parent=31 // pred_check_branch
          %326 = sbr.rel (%p324) target = $region48
        $region47: #{tpu_custom_call.1} parent=31 // pred_region
          %s328 = ssub.s32 128, 128
          %329 = vsyncadd %s320, %s328
          %s330 = smul.addr %s23, 128
          %s331 = scalar_lea.hbm %s3, %s330
          %s333 = sshll.u32 %s323, 4
          %s334 = int_to_ptr.vmem [resolvable:$true] %s333
          %336 = dma.vmem_to_hbm [thread:$0]  %s334, 128, %s331, %s320
        $region48: #{tpu_custom_call.1} parent=31 // pred_fallthru
          _
      $region32: #{tpu_custom_call.1} parent=5 // pred_fallthru
        _
      %p337 = scmp.le.s32.totalorder 2, %s18
      // Predicated region
      $region49: #{tpu_custom_call.1} parent=5 // pred_check
        %p338 = pneg %p337
      $region50: #{tpu_custom_call.1} parent=5 // pred_check_branch
        %340 = sbr.rel (%p338) target = $region52
      $region51: #{tpu_custom_call.1} parent=5 // pred_region
        %s341 = ssub.s32 %s18, 2
        // Predicated region
        $region53: #{tpu_custom_call.1} parent=51 // pred_check
          %p342 = pneg %p125
        $region54: #{tpu_custom_call.1} parent=51 // pred_check_branch
          %344 = sbr.rel (%p342) target = $region56
        $region55: #{tpu_custom_call.1} parent=51 // pred_region
          %s345 = sand.u32 %s110, 1
          %s346 = scalar_lea.sflag [#allocation4], %s345
          %s347 = sand.u32 %s110, 1
          %s348 = smul.addr %s347, 8
          %s349 = scalar_lea.vmem [#allocation8], %s348
          %350 = dma.done %s346, 128
        $region56: #{tpu_custom_call.1} parent=51 // pred_fallthru
          _
      $region52: #{tpu_custom_call.1} parent=5 // pred_fallthru
        _
    $region6: #{tpu_custom_call.1} parent=1 // loop_footer
      %s22 = sadd.s32 1, %s18
    $region7: #{tpu_custom_call.1} parent=1 // loop_footer_branch
      %17 = sbr.rel target = $region3
    $region8: #{tpu_custom_call.1} parent=1 // loop_exit
      _
    %351 = vsyncpa [#allocation3], 1
    %s352 = scalar_lea.sflag [#allocation3], 1
    %353 = vsyncpa %s352, 1
    %354 = vsyncpa [#allocation6], 1
    %s355 = scalar_lea.sflag [#allocation6], 1
    %356 = vsyncpa %s355, 1
    %357 = vsyncpa [#allocation4], 1
    %s358 = scalar_lea.sflag [#allocation4], 1
    %359 = vsyncpa %s358, 1

</llo_original>
